<compile_context>
chip_gen: v6e
topology: v6e:2x2x1
jax: 0.10.0
libtpu: 0.0.40
codegen_flags: <defaults>
</compile_context>

<pallas_src>
import jax
import jax.numpy as jnp
from jax import lax
from jax.experimental import pallas as pl
from jax.experimental.pallas import tpu as pltpu

_EPS = 1e-5  # torch.nn.LayerNorm default


def _round_up(x: int, m: int) -> int:
    return ((x + m - 1) // m) * m


def _cdiv(a: int, b: int) -> int:
    return -(-a // b)


def _pick_tile_s(seq_len, d_model, in_itemsize, out_itemsize,
                 budget_bytes=8 * 1024 * 1024, max_tile=1024):
    """Pick the seq tile size.

    Largest tile whose double-buffered (tile_s, D) input + output blocks fit
    well under the smallest default scoped-VMEM budget, aligned to the sublane
    packing of the narrowest dtype involved, and split into >= 2 tiles when
    possible so v7x's 2 TensorCores both get work."""
    narrow = min(in_itemsize, out_itemsize)
    sub = 8
    if narrow == 2:
        sub = 16
    elif narrow == 1:
        sub = 32
    s_aligned = _round_up(seq_len, sub)
    per_row = 2 * d_model * (in_itemsize + out_itemsize)      # x2: double buffer
    tile = max(sub, min(max_tile, budget_bytes // max(per_row, 1)))
    tile = (tile // sub) * sub
    if tile >= s_aligned:
        if s_aligned > sub:
            tile = _round_up(_cdiv(s_aligned, 2), sub)        # >= 2 parallel tiles
        else:
            tile = s_aligned
    num_tiles = _cdiv(seq_len, tile)
    return tile, num_tiles


def _pos_norm_kernel(emb_ref, gamma_ref, beta_ref, out_ref):
    # emb_ref:   (tile_s, d_model)  rows of the embedding table
    # gamma_ref: (1, d_model)       LayerNorm weight (f32)
    # beta_ref:  (1, d_model)       LayerNorm bias   (f32)
    # out_ref:   (tile_s, d_model)  normalized rows
    x = emb_ref[...].astype(jnp.float32)
    mean = jnp.mean(x, axis=-1, keepdims=True)
    centered = x - mean
    var = jnp.mean(centered * centered, axis=-1, keepdims=True)  # biased (torch)
    inv = lax.rsqrt(var + _EPS)
    out_ref[...] = (centered * inv * gamma_ref[...] + beta_ref[...]).astype(out_ref.dtype)


def learned_positional_encoding(inputs, pos_table, gamma, beta, out_dtype=None):
    """inputs: (batch, seq_len) int array (only its shape matters).
    pos_table: (max_seq_len, d_model), gamma/beta: (d_model,).
    Returns (batch, seq_len, d_model) = LayerNorm(pos_table[:seq_len]) broadcast
    over the batch dimension."""
    batch, seq_len = int(inputs.shape[0]), int(inputs.shape[1])
    max_seq_len, d_model = int(pos_table.shape[0]), int(pos_table.shape[1])
    if seq_len > max_seq_len:
        raise ValueError(
            f"seq_len={seq_len} exceeds max_seq_len={max_seq_len} "
            "(torch.nn.Embedding would raise an index error)")
    if out_dtype is None:
        out_dtype = pos_table.dtype       # f32 by default, matching the torch module

    gamma2 = gamma.astype(jnp.float32).reshape(1, d_model)
    beta2 = beta.astype(jnp.float32).reshape(1, d_model)

    tile_s, num_tiles = _pick_tile_s(
        seq_len, d_model, pos_table.dtype.itemsize, jnp.dtype(out_dtype).itemsize)

    y = pl.pallas_call(
        _pos_norm_kernel,
        out_shape=jax.ShapeDtypeStruct((seq_len, d_model), out_dtype),
        grid_spec=pltpu.PrefetchScalarGridSpec(
            num_scalar_prefetch=0,
            grid=(num_tiles,),
            in_specs=[
                pl.BlockSpec((tile_s, d_model), lambda t: (t, 0)),   # table rows
                pl.BlockSpec((1, d_model), lambda t: (0, 0)),        # gamma
                pl.BlockSpec((1, d_model), lambda t: (0, 0)),        # beta
            ],
            out_specs=pl.BlockSpec((tile_s, d_model), lambda t: (t, 0)),
        ),
        compiler_params=pltpu.CompilerParams(
            dimension_semantics=("parallel",),
        ),
    )(pos_table, gamma2, beta2)

    # Batch broadcast outside the kernel: no B x write amplification inside the
    # kernel; XLA can fuse this broadcast into downstream consumers.
    return jnp.broadcast_to(y[None], (batch, seq_len, d_model))


def _reference(inputs, pos_table, gamma, beta):
    batch, seq_len = inputs.shape[0], inputs.shape[1]
    emb = pos_table[:seq_len]                              # (S, D)
    mean = jnp.mean(emb, axis=-1, keepdims=True)
    var = jnp.mean((emb - mean) ** 2, axis=-1, keepdims=True)
    y = (emb - mean) / jnp.sqrt(var + _EPS) * gamma + beta
    return jnp.broadcast_to(y[None], (batch, seq_len, emb.shape[-1]))


if __name__ == "__main__":
    d_model = 32
    max_seq_len = 64
    batch, seq_len = 2, 8

    key = jax.random.PRNGKey(0)
    k_tab, k_g, k_b, k_in = jax.random.split(key, 4)

    # nn.Embedding default init: N(0, 1)
    pos_table = jax.random.normal(k_tab, (max_seq_len, d_model), jnp.float32)
    # nn.LayerNorm default init is weight=1, bias=0; use deterministic random
    # affine params to exercise the full math path (synthetic weights).
    gamma = 1.0 + 0.1 * jax.random.normal(k_g, (d_model,), jnp.float32)
    beta = 0.1 * jax.random.normal(k_b, (d_model,), jnp.float32)

    # "inputs" are token ids; only their shape (batch, seq_len) is used.
    inputs = jax.random.randint(k_in, (batch, seq_len), 0, 100, jnp.int32)

    out = learned_positional_encoding(inputs, pos_table, gamma, beta)
    out = jax.block_until_ready(out)

    ref = _reference(inputs, pos_table, gamma, beta)
    assert out.shape == (batch, seq_len, d_model)
    assert out.dtype == jnp.float32
    assert jnp.allclose(out, ref, atol=1e-5, rtol=1e-5)

    # Ragged seq_len (not a multiple of the tile) exercises the masked edge block.
    inputs2 = jnp.zeros((3, 13), jnp.int32)
    out2 = jax.block_until_ready(
        learned_positional_encoding(inputs2, pos_table, gamma, beta))
    ref2 = _reference(inputs2, pos_table, gamma, beta)
    assert out2.shape == (3, 13, d_model)
    assert jnp.allclose(out2, ref2, atol=1e-5, rtol=1e-5)

    print("KERNEL_OK")
</pallas_src>

<mosaic_0001>
module attributes {stable_mosaic.version = 11 : i64} {
  func.func @_pos_norm_kernel(%arg0: i32, %arg1: memref<8x32xf32, #tpu.memory_space<vmem>>, %arg2: memref<1x32xf32, #tpu.memory_space<vmem>>, %arg3: memref<1x32xf32, #tpu.memory_space<vmem>>, %arg4: memref<8x32xf32, #tpu.memory_space<vmem>>) attributes {dimension_semantics = [#tpu.dimension_semantics<parallel>], iteration_bounds = array<i64: 1>, scalar_prefetch = 0 : i64, scratch_operands = 0 : i64, tpu.core_type = #tpu.core_type<tc>, window_params = [{transform_indices = @transform_0, window_bounds = array<i64: 8, 32>}, {pipeline_mode = #tpu.pipeline_mode<synchronous>, transform_indices = @transform_1, window_bounds = array<i64: 1, 32>}, {pipeline_mode = #tpu.pipeline_mode<synchronous>, transform_indices = @transform_2, window_bounds = array<i64: 1, 32>}, {transform_indices = @transform_3, window_bounds = array<i64: 8, 32>}]} {
    %c0 = arith.constant 0 : index
    %c0_0 = arith.constant 0 : index
    %0 = vector.load %arg1[%c0, %c0_0] : memref<8x32xf32, #tpu.memory_space<vmem>>, vector<8x32xf32>
    %cst = arith.constant dense<0.000000e+00> : vector<8xf32>
    %1 = vector.multi_reduction <add>, %0, %cst [1] : vector<8x32xf32> to vector<8xf32>
    %2 = vector.shape_cast %1 : vector<8xf32> to vector<8x1xf32>
    %cst_1 = arith.constant 3.200000e+01 : f32
    %3 = vector.broadcast %cst_1 : f32 to vector<8x1xf32>
    %4 = arith.divf %2, %3 : vector<8x1xf32>
    %5 = vector.broadcast %4 : vector<8x1xf32> to vector<8x32xf32>
    %6 = arith.subf %0, %5 : vector<8x32xf32>
    %7 = arith.mulf %6, %6 : vector<8x32xf32>
    %cst_2 = arith.constant dense<0.000000e+00> : vector<8xf32>
    %8 = vector.multi_reduction <add>, %7, %cst_2 [1] : vector<8x32xf32> to vector<8xf32>
    %9 = vector.shape_cast %8 : vector<8xf32> to vector<8x1xf32>
    %cst_3 = arith.constant 3.200000e+01 : f32
    %10 = vector.broadcast %cst_3 : f32 to vector<8x1xf32>
    %11 = arith.divf %9, %10 : vector<8x1xf32>
    %cst_4 = arith.constant 9.99999974E-6 : f32
    %12 = vector.broadcast %cst_4 : f32 to vector<8x1xf32>
    %13 = arith.addf %11, %12 : vector<8x1xf32>
    %14 = math.rsqrt %13 : vector<8x1xf32>
    %15 = vector.broadcast %14 : vector<8x1xf32> to vector<8x32xf32>
    %16 = arith.mulf %6, %15 : vector<8x32xf32>
    %c0_5 = arith.constant 0 : index
    %c0_6 = arith.constant 0 : index
    %17 = vector.load %arg2[%c0_5, %c0_6] : memref<1x32xf32, #tpu.memory_space<vmem>>, vector<1x32xf32>
    %18 = vector.broadcast %17 : vector<1x32xf32> to vector<8x32xf32>
    %19 = arith.mulf %16, %18 : vector<8x32xf32>
    %c0_7 = arith.constant 0 : index
    %c0_8 = arith.constant 0 : index
    %20 = vector.load %arg3[%c0_7, %c0_8] : memref<1x32xf32, #tpu.memory_space<vmem>>, vector<1x32xf32>
    %21 = vector.broadcast %20 : vector<1x32xf32> to vector<8x32xf32>
    %22 = arith.addf %19, %21 : vector<8x32xf32>
    %c0_9 = arith.constant 0 : index
    %c0_10 = arith.constant 0 : index
    %23 = vector.load %arg4[%c0_9, %c0_10] : memref<8x32xf32, #tpu.memory_space<vmem>>, vector<8x32xf32>
    tpu.vector_store %arg4[%c0_9, %c0_10], %22 {strides = array<i32>} : memref<8x32xf32, #tpu.memory_space<vmem>>, vector<8x32xf32>,
    return
  }
  func.func @transform_0(%arg0: i32) -> (i32, i32) {
    %c0_i32 = arith.constant 0 : i32
    %c0_i32_0 = arith.constant 0 : i32
    return %arg0, %c0_i32 : i32, i32
  }
  func.func @transform_1(%arg0: i32) -> (i32, i32) {
    %c0_i32 = arith.constant 0 : i32
    %c0_i32_0 = arith.constant 0 : i32
    %c0_i32_1 = arith.constant 0 : i32
    return %c0_i32, %c0_i32_0 : i32, i32
  }
  func.func @transform_2(%arg0: i32) -> (i32, i32) {
    %c0_i32 = arith.constant 0 : i32
    %c0_i32_0 = arith.constant 0 : i32
    %c0_i32_1 = arith.constant 0 : i32
    return %c0_i32, %c0_i32_0 : i32, i32
  }
  func.func @transform_3(%arg0: i32) -> (i32, i32) {
    %c0_i32 = arith.constant 0 : i32
    %c0_i32_0 = arith.constant 0 : i32
    return %arg0, %c0_i32 : i32, i32
  }
}

</mosaic_0001>

<llo_original>
// kernel: tpu_custom_call.1
$region0: #{tpu_custom_call.1}
  #allocation0 [shape = 'u32[]', space=smem, size = 0x4, offset = 0x4, fixed_abs, tag = 'smem constant byte address 0x4 - core index']
  #allocation1 [shape = 'u32[144,128]{1,0:T(1,128)}', space=vmem, size = 0x12000, scoped, tag = 'internal scratch']
  %s0 = inlined_call_operand.vmem [shape: f32[64,32], index: 0, kind: input, shape index: {}]
  %s1 = inlined_call_operand.vmem [shape: f32[1,32], index: 1, kind: input, shape index: {}]
  %s2 = inlined_call_operand.vmem [shape: f32[1,32], index: 2, kind: input, shape index: {}]
  %s3 = inlined_call_operand.hbm [shape: f32[8,32], index: 3, kind: output, shape index: {}]
  %s4 = sld [smem:[#allocation0]]
  $region22: #{tpu_custom_call.1} parent=0
    _
  %s6 = ssub.s32 1, %s4
  %s7 = scalar_select 0, %s6, %s4
  $region1: #{tpu_custom_call.1} parent=0
    #allocation2 [shape = 'u8[4096]{0}', space=vmem, size = 0x1000, scoped, tag = 'output window, operand 0, single buffered']
    #allocation3 [shape = 's32[1]{0}', space=sflag, size = 0x4, scoped, tag = 'scoped memory for tpu_custom_call.1']
    %8 = vsyncpa [#allocation3], 0
    // Predicated region
    $region2: #{tpu_custom_call.1} parent=1 // pred_check
      _
    $region3: #{tpu_custom_call.1} parent=1 // pred_check_branch
      %10 = sbr.rel (0) target = $region5
    $region4: #{tpu_custom_call.1} parent=1 // pred_region
      _
    $region5: #{tpu_custom_call.1} parent=1 // pred_fallthru
      _
    // Predicated region
    $region6: #{tpu_custom_call.1} parent=1 // pred_check
      _
    $region7: #{tpu_custom_call.1} parent=1 // pred_check_branch
      %12 = sbr.rel (0) target = $region9
    $region8: #{tpu_custom_call.1} parent=1 // pred_region
      _
    $region9: #{tpu_custom_call.1} parent=1 // pred_fallthru
      _
    // Predicated region
    $region10: #{tpu_custom_call.1} parent=1 // pred_check
      _
    $region11: #{tpu_custom_call.1} parent=1 // pred_check_branch
      %14 = sbr.rel (0) target = $region13
    $region12: #{tpu_custom_call.1} parent=1 // pred_region
      _
    $region13: #{tpu_custom_call.1} parent=1 // pred_fallthru
      _
    %v15 = vld [vmem:[%s0] sm:$0xff]
    %vm16 = vcmask 261120
    %v17 = vsel %vm16, %v15, 0.0
    %18 = vadd.xlane.f32.xlu0 %v17
    %v19 = vpop.xlane.xlu0 %18
    %v20 = vrcp.pop 32.0
    %v21 = vmul.f32 %v19, %v20
    %v22 = vsub.f32 %v15, %v21
    %v23 = vmul.f32 %v22, %v22
    %v24 = vsel %vm16, %v23, 0.0
    %25 = vadd.xlane.f32.xlu0 %v24
    %v26 = vpop.xlane.xlu0 %25
    %v27 = vmul.f32 %v26, %v20
    %v28 = vadd.f32 %v27, 1e-05
    %v29 = vrsqrt.pop %v28
    %v30 = vmul.f32 %v22, %v29
    %v31 = vld [vmem:[%s1] sm:$0x1]
    %v33 = vlaneseq
    %v34 = vshrl.u32 %v33, 7
    %v35 = vsub.s32 0, %v34
    %v36 = vrot.slane %v31, %v35
    %v38 = vmul.f32 %v30, %v36
    %v39 = vld [vmem:[%s2] sm:$0x1]
    %v41 = vlaneseq
    %v42 = vshrl.u32 %v41, 7
    %v43 = vsub.s32 0, %v42
    %v44 = vrot.slane %v39, %v43
    %v46 = vadd.f32 %v38, %v44
    %47 = vst.msk [vmem:[#allocation2] sm:$0xff] %vm16, %v46
    // Predicated region
    $region14: #{tpu_custom_call.1} parent=1 // pred_check
      _
    $region15: #{tpu_custom_call.1} parent=1 // pred_check_branch
      %49 = sbr.rel (0) target = $region17
    $region16: #{tpu_custom_call.1} parent=1 // pred_region
      %s51 = ssub.s32 128, 128
      %52 = vsyncadd [#allocation3], %s51
      %s54 = sshll.u32 [#allocation2], 4
      %s55 = int_to_ptr.vmem [resolvable:$true] %s54
      %57 = dma.vmem_to_hbm [thread:$0]  %s55, 128, %s3, [#allocation3]
    $region17: #{tpu_custom_call.1} parent=1 // pred_fallthru
      _
    // Predicated region
    $region18: #{tpu_custom_call.1} parent=1 // pred_check
      _
    $region19: #{tpu_custom_call.1} parent=1 // pred_check_branch
      %59 = sbr.rel (0) target = $region21
    $region20: #{tpu_custom_call.1} parent=1 // pred_region
      %60 = dma.done [#allocation3], 128
    $region21: #{tpu_custom_call.1} parent=1 // pred_fallthru
      _
    %61 = vsyncpa [#allocation3], 1

</llo_original>
